<compile_context>
chip_gen: v5e
topology: v5e:2x2
jax: 0.10.0
libtpu: 0.0.40
codegen_flags: <defaults>
</compile_context>

<pallas_src>
import functools

import jax
import jax.numpy as jnp
from jax.experimental import pallas as pl
from jax.experimental.pallas import tpu as pltpu

_LANE = 128
_SUBLANE = 8


def _round_up(n, m):
    return ((n + m - 1) // m) * m


def _silu(x):
    # SiLU(x) = x * sigmoid(x).  exp -> EUP, approx reciprocal -> EUP (no VPU divide).
    return x * pl.reciprocal(1.0 + jnp.exp(-x), approx=True)


def _mlp_kernel(n_layers, compute_dtype, *refs):
    """Fused MLP kernel.

    refs = (x_ref, w0, b0, w1, b1, ..., w_{L-1}, b_{L-1}, o_ref)
    Hidden layers get SiLU; the trailing Linear does not.
    Activations / bias-add / SiLU stay f32; only the MXU inputs use compute_dtype.
    """
    x_ref = refs[0]
    o_ref = refs[-1]
    param_refs = refs[1:-1]

    h = x_ref[...].astype(jnp.float32)
    for layer in range(n_layers):
        w_ref = param_refs[2 * layer]
        b_ref = param_refs[2 * layer + 1]
        lhs = h.astype(compute_dtype)
        h = jnp.dot(lhs, w_ref[...], preferred_element_type=jnp.float32) + b_ref[...]
        if layer < n_layers - 1:  # hidden layers get SiLU, output layer does not
            h = _silu(h)
    o_ref[...] = h.astype(o_ref.dtype)


def mlp_forward(
    x,
    weights,
    biases,
    *,
    batch_tile=None,
    compute_dtype=jnp.float32,
    feature_align=_LANE,
    single_buffer_weights=True,
):
    """Run the fused MLP Pallas kernel.

    x:        (B, n_input) float32
    weights:  list of (in_f, out_f) float32 arrays (pre-transposed vs torch)
    biases:   list of (1, out_f) float32 arrays
    """
    B, n_in = x.shape
    n_layers = len(weights)
    n_out = weights[-1].shape[1]

    # ---- feature-dim padding to lane multiples (MXU-friendly, lane-dense stores) ----
    dims = [n_in] + [w.shape[1] for w in weights]
    pdims = [_round_up(d, feature_align) for d in dims]

    # ---- batch tiling / padding ----
    if batch_tile is None:
        tb = min(512, _round_up(B, _SUBLANE))
    else:
        tb = _round_up(batch_tile, _SUBLANE)
    B_pad = _round_up(B, tb)
    grid = (B_pad // tb,)

    xp = jnp.pad(x, ((0, B_pad - B), (0, pdims[0] - n_in)))
    wp = [
        jnp.pad(w, ((0, pdims[i] - w.shape[0]), (0, pdims[i + 1] - w.shape[1]))).astype(
            compute_dtype
        )
        for i, w in enumerate(weights)
    ]
    bp = [
        jnp.pad(b, ((0, 0), (0, pdims[i + 1] - b.shape[1]))).astype(jnp.float32)
        for i, b in enumerate(biases)
    ]

    # ---- explicit VMEM budget (v7x has only 64 MiB physical VMEM per TC) ----
    w_bytes = sum(int(w_.size) * w_.dtype.itemsize for w_ in wp)
    b_bytes = sum(int(b_.size) * b_.dtype.itemsize for b_ in bp)
    io_bytes = 2 * tb * (pdims[0] + pdims[-1]) * 4          # double-buffered x / o tiles
    act_bytes = 4 * tb * max(pdims) * 4                     # in-kernel temporaries headroom
    est = io_bytes + 2 * (w_bytes + b_bytes) + act_bytes
    vmem_limit = int(min(max(4 * est, 32 << 20), 64 << 20))

    args = [xp]
    for w_, b_ in zip(wp, bp):
        args.append(w_)
        args.append(b_)

    kernel = functools.partial(_mlp_kernel, n_layers, compute_dtype)

    def _run(use_single_buffer):
        # Weights/biases have a constant index map (resident across all batch tiles);
        # single-buffering them halves their VMEM footprint.
        wb_kwargs = {}
        if use_single_buffer:
            wb_kwargs = dict(pipeline_mode=pl.Buffered(1))

        in_specs = [pl.BlockSpec((tb, pdims[0]), lambda i: (i, 0))]
        for w_, b_ in zip(wp, bp):
            in_specs.append(pl.BlockSpec(w_.shape, lambda i: (0, 0), **wb_kwargs))
            in_specs.append(pl.BlockSpec(b_.shape, lambda i: (0, 0), **wb_kwargs))
        out_spec = pl.BlockSpec((tb, pdims[-1]), lambda i: (i, 0))

        return pl.pallas_call(
            kernel,
            out_shape=jax.ShapeDtypeStruct((B_pad, pdims[-1]), x.dtype),
            grid_spec=pltpu.PrefetchScalarGridSpec(
                num_scalar_prefetch=0,
                grid=grid,
                in_specs=in_specs,
                out_specs=out_spec,
            ),
            compiler_params=pltpu.CompilerParams(
                dimension_semantics=("parallel",),
                vmem_limit_bytes=vmem_limit,
            ),
        )(*args)

    if single_buffer_weights:
        try:
            y_pad = _run(True)
        except Exception:
            # Fallback if this JAX build rejects pipeline_mode on BlockSpec.
            y_pad = _run(False)
    else:
        y_pad = _run(False)

    return y_pad[:B, :n_out]


def init_mlp_params(key, n_input, n_hidden, n_units, n_out):
    """Deterministic synthetic init matching TorchMLPBase layer shapes
    (n_hidden hidden Linear layers + one output Linear)."""
    dims = [n_input] + [n_units] * n_hidden + [n_out]
    weights, biases = [], []
    for i in range(len(dims) - 1):
        key, kw, kb = jax.random.split(key, 3)
        fan_in = dims[i]
        bound = 1.0 / jnp.sqrt(fan_in)
        # stored as (in_features, out_features) == torch weight.T
        weights.append(
            jax.random.uniform(kw, (dims[i], dims[i + 1]), jnp.float32, -bound, bound)
        )
        biases.append(
            jax.random.uniform(kb, (1, dims[i + 1]), jnp.float32, -bound, bound)
        )
    return weights, biases


def mlp_reference(x, weights, biases):
    h = x
    n_layers = len(weights)
    for layer, (w, b) in enumerate(zip(weights, biases)):
        h = h @ w + b
        if layer < n_layers - 1:
            h = jax.nn.silu(h)
    return h


if __name__ == "__main__":
    # Small shapes consistent with the module's doctest-style usage.
    batch, n_input, n_hidden, n_units, n_out = 8, 16, 2, 32, 1

    key = jax.random.PRNGKey(0)
    key, kx = jax.random.split(key)
    x = jax.random.normal(kx, (batch, n_input), dtype=jnp.float32)

    weights, biases = init_mlp_params(key, n_input, n_hidden, n_units, n_out)
    y_ref = mlp_reference(x, weights, biases)

    # f32 path (default).
    y = jax.block_until_ready(mlp_forward(x, weights, biases))
    assert y.shape == (batch, n_out), y.shape
    assert jnp.allclose(y, y_ref, atol=5e-3, rtol=5e-3), float(jnp.max(jnp.abs(y - y_ref)))

    # bf16-MXU path (v6e/v7x oriented): bf16 weights / matmul inputs, f32 accumulation.
    y_bf16 = jax.block_until_ready(
        mlp_forward(x, weights, biases, compute_dtype=jnp.bfloat16)
    )
    assert y_bf16.shape == (batch, n_out), y_bf16.shape
    assert jnp.allclose(y_bf16, y_ref, atol=5e-2, rtol=5e-2), float(
        jnp.max(jnp.abs(y_bf16 - y_ref))
    )

    print("KERNEL_OK")
</pallas_src>

<mosaic_0001>
module attributes {stable_mosaic.version = 11 : i64} {
  func.func @_mlp_kernel(%arg0: i32, %arg1: memref<8x128xf32, #tpu.memory_space<vmem>>, %arg2: memref<128x128xf32, #tpu.memory_space<vmem>>, %arg3: memref<1x128xf32, #tpu.memory_space<vmem>>, %arg4: memref<128x128xf32, #tpu.memory_space<vmem>>, %arg5: memref<1x128xf32, #tpu.memory_space<vmem>>, %arg6: memref<128x128xf32, #tpu.memory_space<vmem>>, %arg7: memref<1x128xf32, #tpu.memory_space<vmem>>, %arg8: memref<8x128xf32, #tpu.memory_space<vmem>>) attributes {dimension_semantics = [#tpu.dimension_semantics<parallel>], iteration_bounds = array<i64: 1>, scalar_prefetch = 0 : i64, scratch_operands = 0 : i64, tpu.core_type = #tpu.core_type<tc>, window_params = [{transform_indices = @transform_0, window_bounds = array<i64: 8, 128>}, {pipeline_mode = #tpu.pipeline_mode<synchronous>, transform_indices = @transform_1, window_bounds = array<i64: 128, 128>}, {pipeline_mode = #tpu.pipeline_mode<synchronous>, transform_indices = @transform_2, window_bounds = array<i64: 1, 128>}, {pipeline_mode = #tpu.pipeline_mode<synchronous>, transform_indices = @transform_3, window_bounds = array<i64: 128, 128>}, {pipeline_mode = #tpu.pipeline_mode<synchronous>, transform_indices = @transform_4, window_bounds = array<i64: 1, 128>}, {pipeline_mode = #tpu.pipeline_mode<synchronous>, transform_indices = @transform_5, window_bounds = array<i64: 128, 128>}, {pipeline_mode = #tpu.pipeline_mode<synchronous>, transform_indices = @transform_6, window_bounds = array<i64: 1, 128>}, {transform_indices = @transform_7, window_bounds = array<i64: 8, 128>}]} {
    %c0 = arith.constant 0 : index
    %c0_0 = arith.constant 0 : index
    %0 = vector.load %arg1[%c0, %c0_0] : memref<8x128xf32, #tpu.memory_space<vmem>>, vector<8x128xf32>
    %c0_1 = arith.constant 0 : index
    %c0_2 = arith.constant 0 : index
    %1 = vector.load %arg2[%c0_1, %c0_2] : memref<128x128xf32, #tpu.memory_space<vmem>>, vector<128x128xf32>
    %cst = arith.constant dense<0.000000e+00> : vector<8x128xf32>
    %2 = tpu.matmul %0, %1, %cst {dimension_numbers = #tpu.dot_dimension_numbers<[1], [0], [0], [1], [0, 0, 1, 1], [], []>} : vector<8x128xf32>, vector<128x128xf32>, vector<8x128xf32> -> vector<8x128xf32>
    %c0_3 = arith.constant 0 : index
    %c0_4 = arith.constant 0 : index
    %3 = vector.load %arg3[%c0_3, %c0_4] : memref<1x128xf32, #tpu.memory_space<vmem>>, vector<1x128xf32>
    %4 = vector.broadcast %3 : vector<1x128xf32> to vector<8x128xf32>
    %5 = arith.addf %2, %4 : vector<8x128xf32>
    %cst_5 = arith.constant 0.000000e+00 : f32
    %6 = vector.broadcast %cst_5 : f32 to vector<8x128xf32>
    %7 = arith.subf %6, %5 : vector<8x128xf32>
    %8 = math.exp %7 : vector<8x128xf32>
    %cst_6 = arith.constant 1.000000e+00 : f32
    %9 = vector.broadcast %cst_6 : f32 to vector<8x128xf32>
    %10 = arith.addf %9, %8 : vector<8x128xf32>
    %11 = tpu.reciprocal %10 {approx = true} : vector<8x128xf32> -> vector<8x128xf32>
    %12 = arith.mulf %5, %11 : vector<8x128xf32>
    %c0_7 = arith.constant 0 : index
    %c0_8 = arith.constant 0 : index
    %13 = vector.load %arg4[%c0_7, %c0_8] : memref<128x128xf32, #tpu.memory_space<vmem>>, vector<128x128xf32>
    %cst_9 = arith.constant dense<0.000000e+00> : vector<8x128xf32>
    %14 = tpu.matmul %12, %13, %cst_9 {dimension_numbers = #tpu.dot_dimension_numbers<[1], [0], [0], [1], [0, 0, 1, 1], [], []>} : vector<8x128xf32>, vector<128x128xf32>, vector<8x128xf32> -> vector<8x128xf32>
    %c0_10 = arith.constant 0 : index
    %c0_11 = arith.constant 0 : index
    %15 = vector.load %arg5[%c0_10, %c0_11] : memref<1x128xf32, #tpu.memory_space<vmem>>, vector<1x128xf32>
    %16 = vector.broadcast %15 : vector<1x128xf32> to vector<8x128xf32>
    %17 = arith.addf %14, %16 : vector<8x128xf32>
    %cst_12 = arith.constant 0.000000e+00 : f32
    %18 = vector.broadcast %cst_12 : f32 to vector<8x128xf32>
    %19 = arith.subf %18, %17 : vector<8x128xf32>
    %20 = math.exp %19 : vector<8x128xf32>
    %cst_13 = arith.constant 1.000000e+00 : f32
    %21 = vector.broadcast %cst_13 : f32 to vector<8x128xf32>
    %22 = arith.addf %21, %20 : vector<8x128xf32>
    %23 = tpu.reciprocal %22 {approx = true} : vector<8x128xf32> -> vector<8x128xf32>
    %24 = arith.mulf %17, %23 : vector<8x128xf32>
    %c0_14 = arith.constant 0 : index
    %c0_15 = arith.constant 0 : index
    %25 = vector.load %arg6[%c0_14, %c0_15] : memref<128x128xf32, #tpu.memory_space<vmem>>, vector<128x128xf32>
    %cst_16 = arith.constant dense<0.000000e+00> : vector<8x128xf32>
    %26 = tpu.matmul %24, %25, %cst_16 {dimension_numbers = #tpu.dot_dimension_numbers<[1], [0], [0], [1], [0, 0, 1, 1], [], []>} : vector<8x128xf32>, vector<128x128xf32>, vector<8x128xf32> -> vector<8x128xf32>
    %c0_17 = arith.constant 0 : index
    %c0_18 = arith.constant 0 : index
    %27 = vector.load %arg7[%c0_17, %c0_18] : memref<1x128xf32, #tpu.memory_space<vmem>>, vector<1x128xf32>
    %28 = vector.broadcast %27 : vector<1x128xf32> to vector<8x128xf32>
    %29 = arith.addf %26, %28 : vector<8x128xf32>
    %c0_19 = arith.constant 0 : index
    %c0_20 = arith.constant 0 : index
    %30 = vector.load %arg8[%c0_19, %c0_20] : memref<8x128xf32, #tpu.memory_space<vmem>>, vector<8x128xf32>
    tpu.vector_store %arg8[%c0_19, %c0_20], %29 {strides = array<i32>} : memref<8x128xf32, #tpu.memory_space<vmem>>, vector<8x128xf32>,
    return
  }
  func.func @transform_0(%arg0: i32) -> (i32, i32) {
    %c0_i32 = arith.constant 0 : i32
    %c0_i32_0 = arith.constant 0 : i32
    return %arg0, %c0_i32 : i32, i32
  }
  func.func @transform_1(%arg0: i32) -> (i32, i32) {
    %c0_i32 = arith.constant 0 : i32
    %c0_i32_0 = arith.constant 0 : i32
    %c0_i32_1 = arith.constant 0 : i32
    return %c0_i32, %c0_i32_0 : i32, i32
  }
  func.func @transform_2(%arg0: i32) -> (i32, i32) {
    %c0_i32 = arith.constant 0 : i32
    %c0_i32_0 = arith.constant 0 : i32
    %c0_i32_1 = arith.constant 0 : i32
    return %c0_i32, %c0_i32_0 : i32, i32
  }
  func.func @transform_3(%arg0: i32) -> (i32, i32) {
    %c0_i32 = arith.constant 0 : i32
    %c0_i32_0 = arith.constant 0 : i32
    %c0_i32_1 = arith.constant 0 : i32
    return %c0_i32, %c0_i32_0 : i32, i32
  }
  func.func @transform_4(%arg0: i32) -> (i32, i32) {
    %c0_i32 = arith.constant 0 : i32
    %c0_i32_0 = arith.constant 0 : i32
    %c0_i32_1 = arith.constant 0 : i32
    return %c0_i32, %c0_i32_0 : i32, i32
  }
  func.func @transform_5(%arg0: i32) -> (i32, i32) {
    %c0_i32 = arith.constant 0 : i32
    %c0_i32_0 = arith.constant 0 : i32
    %c0_i32_1 = arith.constant 0 : i32
    return %c0_i32, %c0_i32_0 : i32, i32
  }
  func.func @transform_6(%arg0: i32) -> (i32, i32) {
    %c0_i32 = arith.constant 0 : i32
    %c0_i32_0 = arith.constant 0 : i32
    %c0_i32_1 = arith.constant 0 : i32
    return %c0_i32, %c0_i32_0 : i32, i32
  }
  func.func @transform_7(%arg0: i32) -> (i32, i32) {
    %c0_i32 = arith.constant 0 : i32
    %c0_i32_0 = arith.constant 0 : i32
    return %arg0, %c0_i32 : i32, i32
  }
}

module attributes {stable_mosaic.version = 11 : i64} {
  func.func @_mlp_kernel(%arg0: i32, %arg1: memref<8x128xf32, #tpu.memory_space<vmem>>, %arg2: memref<128x128xf32, #tpu.memory_space<vmem>>, %arg3: memref<1x128xf32, #tpu.memory_space<vmem>>, %arg4: memref<128x128xf32, #tpu.memory_space<vmem>>, %arg5: memref<1x128xf32, #tpu.memory_space<vmem>>, %arg6: memref<128x128xf32, #tpu.memory_space<vmem>>, %arg7: memref<1x128xf32, #tpu.memory_space<vmem>>, %arg8: memref<8x128xf32, #tpu.memory_space<vmem>>) attributes {dimension_semantics = [#tpu.dimension_semantics<parallel>], iteration_bounds = array<i64: 1>, scalar_prefetch = 0 : i64, scratch_operands = 0 : i64, tpu.core_type = #tpu.core_type<tc>, window_params = [{transform_indices = @transform_0, window_bounds = array<i64: 8, 128>}, {pipeline_mode = #tpu.pipeline_mode<synchronous>, transform_indices = @transform_1, window_bounds = array<i64: 128, 128>}, {pipeline_mode = #tpu.pipeline_mode<synchronous>, transform_indices = @transform_2, window_bounds = array<i64: 1, 128>}, {pipeline_mode = #tpu.pipeline_mode<synchronous>, transform_indices = @transform_3, window_bounds = array<i64: 128, 128>}, {pipeline_mode = #tpu.pipeline_mode<synchronous>, transform_indices = @transform_4, window_bounds = array<i64: 1, 128>}, {pipeline_mode = #tpu.pipeline_mode<synchronous>, transform_indices = @transform_5, window_bounds = array<i64: 128, 128>}, {pipeline_mode = #tpu.pipeline_mode<synchronous>, transform_indices = @transform_6, window_bounds = array<i64: 1, 128>}, {transform_indices = @transform_7, window_bounds = array<i64: 8, 128>}]} {
    %c0 = arith.constant 0 : index
    %c0_0 = arith.constant 0 : index
    %0 = vector.load %arg1[%c0, %c0_0] : memref<8x128xf32, #tpu.memory_space<vmem>>, vector<8x128xf32>
    %c0_1 = arith.constant 0 : index
    %c0_2 = arith.constant 0 : index
    %1 = vector.load %arg2[%c0_1, %c0_2] : memref<128x128xf32, #tpu.memory_space<vmem>>, vector<128x128xf32>
    %cst = arith.constant dense<0.000000e+00> : vector<8x128xf32>
    %2 = tpu.matmul %0, %1, %cst {dimension_numbers = #tpu.dot_dimension_numbers<[1], [0], [0], [1], [0, 0, 1, 1], [], []>} : vector<8x128xf32>, vector<128x128xf32>, vector<8x128xf32> -> vector<8x128xf32>
    %c0_3 = arith.constant 0 : index
    %c0_4 = arith.constant 0 : index
    %3 = vector.load %arg3[%c0_3, %c0_4] : memref<1x128xf32, #tpu.memory_space<vmem>>, vector<1x128xf32>
    %4 = vector.broadcast %3 : vector<1x128xf32> to vector<8x128xf32>
    %5 = arith.addf %2, %4 : vector<8x128xf32>
    %cst_5 = arith.constant 0.000000e+00 : f32
    %6 = vector.broadcast %cst_5 : f32 to vector<8x128xf32>
    %7 = arith.subf %6, %5 : vector<8x128xf32>
    %8 = math.exp %7 : vector<8x128xf32>
    %cst_6 = arith.constant 1.000000e+00 : f32
    %9 = vector.broadcast %cst_6 : f32 to vector<8x128xf32>
    %10 = arith.addf %9, %8 : vector<8x128xf32>
    %11 = tpu.reciprocal %10 {approx = true} : vector<8x128xf32> -> vector<8x128xf32>
    %12 = arith.mulf %5, %11 : vector<8x128xf32>
    %c0_7 = arith.constant 0 : index
    %c0_8 = arith.constant 0 : index
    %13 = vector.load %arg4[%c0_7, %c0_8] : memref<128x128xf32, #tpu.memory_space<vmem>>, vector<128x128xf32>
    %cst_9 = arith.constant dense<0.000000e+00> : vector<8x128xf32>
    %14 = tpu.matmul %12, %13, %cst_9 {dimension_numbers = #tpu.dot_dimension_numbers<[1], [0], [0], [1], [0, 0, 1, 1], [], []>} : vector<8x128xf32>, vector<128x128xf32>, vector<8x128xf32> -> vector<8x128xf32>
    %c0_10 = arith.constant 0 : index
    %c0_11 = arith.constant 0 : index
    %15 = vector.load %arg5[%c0_10, %c0_11] : memref<1x128xf32, #tpu.memory_space<vmem>>, vector<1x128xf32>
    %16 = vector.broadcast %15 : vector<1x128xf32> to vector<8x128xf32>
    %17 = arith.addf %14, %16 : vector<8x128xf32>
    %cst_12 = arith.constant 0.000000e+00 : f32
    %18 = vector.broadcast %cst_12 : f32 to vector<8x128xf32>
    %19 = arith.subf %18, %17 : vector<8x128xf32>
    %20 = math.exp %19 : vector<8x128xf32>
    %cst_13 = arith.constant 1.000000e+00 : f32
    %21 = vector.broadcast %cst_13 : f32 to vector<8x128xf32>
    %22 = arith.addf %21, %20 : vector<8x128xf32>
    %23 = tpu.reciprocal %22 {approx = true} : vector<8x128xf32> -> vector<8x128xf32>
    %24 = arith.mulf %17, %23 : vector<8x128xf32>
    %c0_14 = arith.constant 0 : index
    %c0_15 = arith.constant 0 : index
    %25 = vector.load %arg6[%c0_14, %c0_15] : memref<128x128xf32, #tpu.memory_space<vmem>>, vector<128x128xf32>
    %cst_16 = arith.constant dense<0.000000e+00> : vector<8x128xf32>
    %26 = tpu.matmul %24, %25, %cst_16 {dimension_numbers = #tpu.dot_dimension_numbers<[1], [0], [0], [1], [0, 0, 1, 1], [], []>} : vector<8x128xf32>, vector<128x128xf32>, vector<8x128xf32> -> vector<8x128xf32>
    %c0_17 = arith.constant 0 : index
    %c0_18 = arith.constant 0 : index
    %27 = vector.load %arg7[%c0_17, %c0_18] : memref<1x128xf32, #tpu.memory_space<vmem>>, vector<1x128xf32>
    %28 = vector.broadcast %27 : vector<1x128xf32> to vector<8x128xf32>
    %29 = arith.addf %26, %28 : vector<8x128xf32>
    %c0_19 = arith.constant 0 : index
    %c0_20 = arith.constant 0 : index
    %30 = vector.load %arg8[%c0_19, %c0_20] : memref<8x128xf32, #tpu.memory_space<vmem>>, vector<8x128xf32>
    tpu.vector_store %arg8[%c0_19, %c0_20], %29 {strides = array<i32>} : memref<8x128xf32, #tpu.memory_space<vmem>>, vector<8x128xf32>,
    return
  }
  func.func @transform_0(%arg0: i32) -> (i32, i32) {
    %c0_i32 = arith.constant 0 : i32
    %c0_i32_0 = arith.constant 0 : i32
    return %arg0, %c0_i32 : i32, i32
  }
  func.func @transform_1(%arg0: i32) -> (i32, i32) {
    %c0_i32 = arith.constant 0 : i32
    %c0_i32_0 = arith.constant 0 : i32
    %c0_i32_1 = arith.constant 0 : i32
    return %c0_i32, %c0_i32_0 : i32, i32
  }
  func.func @transform_2(%arg0: i32) -> (i32, i32) {
    %c0_i32 = arith.constant 0 : i32
    %c0_i32_0 = arith.constant 0 : i32
    %c0_i32_1 = arith.constant 0 : i32
    return %c0_i32, %c0_i32_0 : i32, i32
  }
  func.func @transform_3(%arg0: i32) -> (i32, i32) {
    %c0_i32 = arith.constant 0 : i32
    %c0_i32_0 = arith.constant 0 : i32
    %c0_i32_1 = arith.constant 0 : i32
    return %c0_i32, %c0_i32_0 : i32, i32
  }
  func.func @transform_4(%arg0: i32) -> (i32, i32) {
    %c0_i32 = arith.constant 0 : i32
    %c0_i32_0 = arith.constant 0 : i32
    %c0_i32_1 = arith.constant 0 : i32
    return %c0_i32, %c0_i32_0 : i32, i32
  }
  func.func @transform_5(%arg0: i32) -> (i32, i32) {
    %c0_i32 = arith.constant 0 : i32
    %c0_i32_0 = arith.constant 0 : i32
    %c0_i32_1 = arith.constant 0 : i32
    return %c0_i32, %c0_i32_0 : i32, i32
  }
  func.func @transform_6(%arg0: i32) -> (i32, i32) {
    %c0_i32 = arith.constant 0 : i32
    %c0_i32_0 = arith.constant 0 : i32
    %c0_i32_1 = arith.constant 0 : i32
    return %c0_i32, %c0_i32_0 : i32, i32
  }
  func.func @transform_7(%arg0: i32) -> (i32, i32) {
    %c0_i32 = arith.constant 0 : i32
    %c0_i32_0 = arith.constant 0 : i32
    return %arg0, %c0_i32 : i32, i32
  }
}

</mosaic_0001>

<llo_original>
// kernel: tpu_custom_call.1
$region0: #{tpu_custom_call.1}
  #allocation0 [shape = 'u32[]', space=smem, size = 0x4, offset = 0x4, fixed_abs, tag = 'smem constant byte address 0x4 - core index']
  #allocation1 [shape = 'u32[72,128]{1,0:T(1,128)}', space=vmem, size = 0x9000, scoped, tag = 'internal scratch']
  %s0 = inlined_call_operand.hbm [shape: f32[8,128], index: 0, kind: input, shape index: {}]
  %s1 = inlined_call_operand.hbm [shape: f32[128,128], index: 1, kind: input, shape index: {}]
  %s2 = inlined_call_operand.vmem [shape: f32[1,128], index: 2, kind: input, shape index: {}]
  %s3 = inlined_call_operand.hbm [shape: f32[128,128], index: 3, kind: input, shape index: {}]
  %s4 = inlined_call_operand.vmem [shape: f32[1,128], index: 4, kind: input, shape index: {}]
  %s5 = inlined_call_operand.hbm [shape: f32[128,128], index: 5, kind: input, shape index: {}]
  %s6 = inlined_call_operand.vmem [shape: f32[1,128], index: 6, kind: input, shape index: {}]
  %s7 = inlined_call_operand.hbm [shape: f32[8,128], index: 7, kind: output, shape index: {}]
  %s8 = sld [smem:[#allocation0]]
  $region54: #{tpu_custom_call.1} parent=0
    _
  %s10 = ssub.s32 1, %s8
  %s11 = scalar_select 0, %s10, %s8
  $region1: #{tpu_custom_call.1} parent=0
    #allocation2 [shape = 'u8[4096]{0}', space=vmem, size = 0x1000, scoped, tag = 'input window, operand 0, single buffered']
    #allocation3 [shape = 's32[1]{0}', space=sflag, size = 0x4, scoped, tag = 'scoped memory for tpu_custom_call.1']
    #allocation4 [shape = 's32[1]{0}', space=sflag, size = 0x4, scoped, tag = 'scoped memory for tpu_custom_call.1']
    #allocation5 [shape = 'u8[65536]{0}', space=vmem, size = 0x10000, scoped, tag = 'input window, operand 1, single buffered']
    #allocation6 [shape = 's32[1]{0}', space=sflag, size = 0x4, scoped, tag = 'scoped memory for tpu_custom_call.1']
    #allocation7 [shape = 'u8[65536]{0}', space=vmem, size = 0x10000, scoped, tag = 'input window, operand 3, single buffered']
    #allocation8 [shape = 'u8[65536]{0}', space=vmem, size = 0x10000, scoped, tag = 'input window, operand 5, single buffered']
    #allocation9 [shape = 's32[1]{0}', space=sflag, size = 0x4, scoped, tag = 'scoped memory for tpu_custom_call.1']
    #allocation10 [shape = 'u8[4096]{0}', space=vmem, size = 0x1000, scoped, tag = 'output window, operand 0, single buffered']
    %12 = vsyncpa [#allocation3], 0
    %13 = vsyncpa [#allocation6], 0
    %14 = vsyncpa [#allocation9], 0
    %15 = vsyncpa [#allocation4], 0
    // Predicated region
    $region2: #{tpu_custom_call.1} parent=1 // pred_check
      _
    $region3: #{tpu_custom_call.1} parent=1 // pred_check_branch
      %17 = sbr.rel (0) target = $region5
    $region4: #{tpu_custom_call.1} parent=1 // pred_region
      %19 = vsyncadd [#allocation3], 0
      %s21 = sshll.u32 %s0, 4
      %s22 = int_to_ptr.hbm [resolvable:$true] %s21
      %s23 = sshll.u32 [#allocation2], 4
      %s24 = int_to_ptr.vmem [resolvable:$true] %s23
      %26 = dma.hbm_to_vmem [thread:$0]  %s22, 128, %s24, [#allocation3]
    $region5: #{tpu_custom_call.1} parent=1 // pred_fallthru
      _
    // Predicated region
    $region6: #{tpu_custom_call.1} parent=1 // pred_check
      _
    $region7: #{tpu_custom_call.1} parent=1 // pred_check_branch
      %28 = sbr.rel (0) target = $region9
    $region8: #{tpu_custom_call.1} parent=1 // pred_region
      %30 = vsyncadd [#allocation6], 0
      %s31 = sshll.u32 %s1, 4
      %s32 = int_to_ptr.hbm [resolvable:$true] %s31
      %s33 = sshll.u32 [#allocation5], 4
      %s34 = int_to_ptr.vmem [resolvable:$true] %s33
      %39 = dma.hbm_to_vmem [thread:$0]  %s32, 2048, %s34, [#allocation6], 128, 128, 8
    $region9: #{tpu_custom_call.1} parent=1 // pred_fallthru
      _
    // Predicated region
    $region10: #{tpu_custom_call.1} parent=1 // pred_check
      _
    $region11: #{tpu_custom_call.1} parent=1 // pred_check_branch
      %41 = sbr.rel (0) target = $region13
    $region12: #{tpu_custom_call.1} parent=1 // pred_region
      _
    $region13: #{tpu_custom_call.1} parent=1 // pred_fallthru
      _
    // Predicated region
    $region14: #{tpu_custom_call.1} parent=1 // pred_check
      _
    $region15: #{tpu_custom_call.1} parent=1 // pred_check_branch
      %43 = sbr.rel (0) target = $region17
    $region16: #{tpu_custom_call.1} parent=1 // pred_region
      %45 = vsyncadd [#allocation6], 0
      %s46 = sshll.u32 %s3, 4
      %s47 = int_to_ptr.hbm [resolvable:$true] %s46
      %s48 = sshll.u32 [#allocation7], 4
      %s49 = int_to_ptr.vmem [resolvable:$true] %s48
      %54 = dma.hbm_to_vmem [thread:$0]  %s47, 2048, %s49, [#allocation6], 128, 128, 8
    $region17: #{tpu_custom_call.1} parent=1 // pred_fallthru
      _
    // Predicated region
    $region18: #{tpu_custom_call.1} parent=1 // pred_check
      _
    $region19: #{tpu_custom_call.1} parent=1 // pred_check_branch
      %56 = sbr.rel (0) target = $region21
    $region20: #{tpu_custom_call.1} parent=1 // pred_region
      _
    $region21: #{tpu_custom_call.1} parent=1 // pred_fallthru
      _
    // Predicated region
    $region22: #{tpu_custom_call.1} parent=1 // pred_check
      _
    $region23: #{tpu_custom_call.1} parent=1 // pred_check_branch
      %58 = sbr.rel (0) target = $region25
    $region24: #{tpu_custom_call.1} parent=1 // pred_region
      %60 = vsyncadd [#allocation9], 0
      %s61 = sshll.u32 %s5, 4
      %s62 = int_to_ptr.hbm [resolvable:$true] %s61
      %s63 = sshll.u32 [#allocation8], 4
      %s64 = int_to_ptr.vmem [resolvable:$true] %s63
      %69 = dma.hbm_to_vmem [thread:$0]  %s62, 2048, %s64, [#allocation9], 128, 128, 8
    $region25: #{tpu_custom_call.1} parent=1 // pred_fallthru
      _
    // Predicated region
    $region26: #{tpu_custom_call.1} parent=1 // pred_check
      _
    $region27: #{tpu_custom_call.1} parent=1 // pred_check_branch
      %71 = sbr.rel (0) target = $region29
    $region28: #{tpu_custom_call.1} parent=1 // pred_region
      _
    $region29: #{tpu_custom_call.1} parent=1 // pred_fallthru
      _
    // Predicated region
    $region30: #{tpu_custom_call.1} parent=1 // pred_check
      _
    $region31: #{tpu_custom_call.1} parent=1 // pred_check_branch
      %73 = sbr.rel (0) target = $region33
    $region32: #{tpu_custom_call.1} parent=1 // pred_region
      %75 = dma.done [#allocation3], 128
    $region33: #{tpu_custom_call.1} parent=1 // pred_fallthru
      _
    // Predicated region
    $region34: #{tpu_custom_call.1} parent=1 // pred_check
      _
    $region35: #{tpu_custom_call.1} parent=1 // pred_check_branch
      %77 = sbr.rel (0) target = $region37
    $region36: #{tpu_custom_call.1} parent=1 // pred_region
      %79 = dma.done [#allocation6], 2048
    $region37: #{tpu_custom_call.1} parent=1 // pred_fallthru
      _
    // Predicated region
    $region38: #{tpu_custom_call.1} parent=1 // pred_check
      _
    $region39: #{tpu_custom_call.1} parent=1 // pred_check_branch
      %81 = sbr.rel (0) target = $region41
    $region40: #{tpu_custom_call.1} parent=1 // pred_region
      %83 = dma.done [#allocation6], 2048
    $region41: #{tpu_custom_call.1} parent=1 // pred_fallthru
      _
    // Predicated region
    $region42: #{tpu_custom_call.1} parent=1 // pred_check
      _
    $region43: #{tpu_custom_call.1} parent=1 // pred_check_branch
      %85 = sbr.rel (0) target = $region45
    $region44: #{tpu_custom_call.1} parent=1 // pred_region
      %87 = dma.done [#allocation9], 2048
    $region45: #{tpu_custom_call.1} parent=1 // pred_fallthru
      _
    %v88 = vld [vmem:[#allocation2] sm:$0xff]
    %v89 = vld [vmem:[#allocation5] sm:$0xff]
    %v90 = vld [vmem:[#allocation5 + $0x8] sm:$0xff]
    %v91 = vld [vmem:[#allocation5 + $0x10] sm:$0xff]
    %v92 = vld [vmem:[#allocation5 + $0x18] sm:$0xff]
    %v93 = vld [vmem:[#allocation5 + $0x20] sm:$0xff]
    %v94 = vld [vmem:[#allocation5 + $0x28] sm:$0xff]
    %v95 = vld [vmem:[#allocation5 + $0x30] sm:$0xff]
    %v96 = vld [vmem:[#allocation5 + $0x38] sm:$0xff]
    %v97 = vld [vmem:[#allocation5 + $0x40] sm:$0xff]
    %v98 = vld [vmem:[#allocation5 + $0x48] sm:$0xff]
    %v99 = vld [vmem:[#allocation5 + $0x50] sm:$0xff]
    %v100 = vld [vmem:[#allocation5 + $0x58] sm:$0xff]
    %v101 = vld [vmem:[#allocation5 + $0x60] sm:$0xff]
    %v102 = vld [vmem:[#allocation5 + $0x68] sm:$0xff]
    %v103 = vld [vmem:[#allocation5 + $0x70] sm:$0xff]
    %v104 = vld [vmem:[#allocation5 + $0x78] sm:$0xff]
    %v105 = vld [vmem:[%s2] sm:$0x1]
    %v107 = vperm.slane %v105, 0
    %109 = vmatpush.msra.mxu0 %v104
    %110 = vmatpush.msra.mxu0 %v103
    %111 = vmatpush.msra.mxu0 %v102
    %112 = vmatpush.msra.mxu0 %v101
    %113 = vmatpush.msra.mxu0 %v100
    %114 = vmatpush.msra.mxu0 %v99
    %115 = vmatpush.msra.mxu0 %v98
    %116 = vmatpush.msra.mxu0 %v97
    %117 = vmatpush.msra.mxu0 %v96
    %118 = vmatpush.msra.mxu0 %v95
    %119 = vmatpush.msra.mxu0 %v94
    %120 = vmatpush.msra.mxu0 %v93
    %121 = vmatpush.msra.mxu0 %v92
    %122 = vmatpush.msra.mxu0 %v91
    %123 = vmatpush.msra.mxu0 %v90
    %124 = vmatpush.msra.mxu0 %v89
    %125 = vmatmul.f32.gmra.mxu0 %v88
    %v126 = vpop.f32.mrf.mxu0
    %v127 = vadd.f32 %v107, %v126
    %128 = vdwg.mxu0
    %v129 = vsub.f32 0.0, %v127
    %v130 = vmul.f32 %v129, 1.442695
    %v131 = vpow.pop %v130
    %v132 = vadd.f32 %v131, 1.0
    %v133 = vrcp.pop %v132
    %v134 = vmul.f32 %v127, %v133
    %v135 = vld [vmem:[#allocation7] sm:$0xff]
    %v136 = vld [vmem:[#allocation7 + $0x8] sm:$0xff]
    %v137 = vld [vmem:[#allocation7 + $0x10] sm:$0xff]
    %v138 = vld [vmem:[#allocation7 + $0x18] sm:$0xff]
    %v139 = vld [vmem:[#allocation7 + $0x20] sm:$0xff]
    %v140 = vld [vmem:[#allocation7 + $0x28] sm:$0xff]
    %v141 = vld [vmem:[#allocation7 + $0x30] sm:$0xff]
    %v142 = vld [vmem:[#allocation7 + $0x38] sm:$0xff]
    %v143 = vld [vmem:[#allocation7 + $0x40] sm:$0xff]
    %v144 = vld [vmem:[#allocation7 + $0x48] sm:$0xff]
    %v145 = vld [vmem:[#allocation7 + $0x50] sm:$0xff]
    %v146 = vld [vmem:[#allocation7 + $0x58] sm:$0xff]
    %v147 = vld [vmem:[#allocation7 + $0x60] sm:$0xff]
    %v148 = vld [vmem:[#allocation7 + $0x68] sm:$0xff]
    %v149 = vld [vmem:[#allocation7 + $0x70] sm:$0xff]
    %v150 = vld [vmem:[#allocation7 + $0x78] sm:$0xff]
    %v151 = vld [vmem:[%s4] sm:$0x1]
    %v153 = vperm.slane %v151, 0
    %155 = vmatpush.msra.mxu0 %v150
    %156 = vmatpush.msra.mxu0 %v149
    %157 = vmatpush.msra.mxu0 %v148
    %158 = vmatpush.msra.mxu0 %v147
    %159 = vmatpush.msra.mxu0 %v146
    %160 = vmatpush.msra.mxu0 %v145
    %161 = vmatpush.msra.mxu0 %v144
    %162 = vmatpush.msra.mxu0 %v143
    %163 = vmatpush.msra.mxu0 %v142
    %164 = vmatpush.msra.mxu0 %v141
    %165 = vmatpush.msra.mxu0 %v140
    %166 = vmatpush.msra.mxu0 %v139
    %167 = vmatpush.msra.mxu0 %v138
    %168 = vmatpush.msra.mxu0 %v137
    %169 = vmatpush.msra.mxu0 %v136
    %170 = vmatpush.msra.mxu0 %v135
    %171 = vmatmul.f32.gmra.mxu0 %v134
    %v172 = vpop.f32.mrf.mxu0
    %v173 = vadd.f32 %v153, %v172
    %174 = vdwg.mxu0
    %v175 = vsub.f32 0.0, %v173
    %v176 = vmul.f32 %v175, 1.442695
    %v177 = vpow.pop %v176
    %v178 = vadd.f32 %v177, 1.0
    %v179 = vrcp.pop %v178
    %v180 = vmul.f32 %v173, %v179
    %v181 = vld [vmem:[#allocation8] sm:$0xff]
    %v182 = vld [vmem:[#allocation8 + $0x8] sm:$0xff]
    %v183 = vld [vmem:[#allocation8 + $0x10] sm:$0xff]
    %v184 = vld [vmem:[#allocation8 + $0x18] sm:$0xff]
    %v185 = vld [vmem:[#allocation8 + $0x20] sm:$0xff]
    %v186 = vld [vmem:[#allocation8 + $0x28] sm:$0xff]
    %v187 = vld [vmem:[#allocation8 + $0x30] sm:$0xff]
    %v188 = vld [vmem:[#allocation8 + $0x38] sm:$0xff]
    %v189 = vld [vmem:[#allocation8 + $0x40] sm:$0xff]
    %v190 = vld [vmem:[#allocation8 + $0x48] sm:$0xff]
    %v191 = vld [vmem:[#allocation8 + $0x50] sm:$0xff]
    %v192 = vld [vmem:[#allocation8 + $0x58] sm:$0xff]
    %v193 = vld [vmem:[#allocation8 + $0x60] sm:$0xff]
    %v194 = vld [vmem:[#allocation8 + $0x68] sm:$0xff]
    %v195 = vld [vmem:[#allocation8 + $0x70] sm:$0xff]
    %v196 = vld [vmem:[#allocation8 + $0x78] sm:$0xff]
    %v197 = vld [vmem:[%s6] sm:$0x1]
    %v199 = vperm.slane %v197, 0
    %201 = vmatpush.msra.mxu0 %v196
    %202 = vmatpush.msra.mxu0 %v195
    %203 = vmatpush.msra.mxu0 %v194
    %204 = vmatpush.msra.mxu0 %v193
    %205 = vmatpush.msra.mxu0 %v192
    %206 = vmatpush.msra.mxu0 %v191
    %207 = vmatpush.msra.mxu0 %v190
    %208 = vmatpush.msra.mxu0 %v189
    %209 = vmatpush.msra.mxu0 %v188
    %210 = vmatpush.msra.mxu0 %v187
    %211 = vmatpush.msra.mxu0 %v186
    %212 = vmatpush.msra.mxu0 %v185
    %213 = vmatpush.msra.mxu0 %v184
    %214 = vmatpush.msra.mxu0 %v183
    %215 = vmatpush.msra.mxu0 %v182
    %216 = vmatpush.msra.mxu0 %v181
    %217 = vmatmul.f32.gmra.mxu0 %v180
    %v218 = vpop.f32.mrf.mxu0
    %v219 = vadd.f32 %v199, %v218
    %220 = vdwg.mxu0
    %221 = vst [vmem:[#allocation10] sm:$0xff] %v219
    // Predicated region
    $region46: #{tpu_custom_call.1} parent=1 // pred_check
      _
    $region47: #{tpu_custom_call.1} parent=1 // pred_check_branch
      %223 = sbr.rel (0) target = $region49
    $region48: #{tpu_custom_call.1} parent=1 // pred_region
      %225 = vsyncadd [#allocation4], 0
      %s227 = sshll.u32 [#allocation10], 4
      %s228 = int_to_ptr.vmem [resolvable:$true] %s227
      %s229 = sshll.u32 %s7, 4
      %s230 = int_to_ptr.hbm [resolvable:$true] %s229
      %232 = dma.vmem_to_hbm [thread:$0]  %s228, 128, %s230, [#allocation4]
    $region49: #{tpu_custom_call.1} parent=1 // pred_fallthru
      _
    // Predicated region
    $region50: #{tpu_custom_call.1} parent=1 // pred_check
      _
    $region51: #{tpu_custom_call.1} parent=1 // pred_check_branch
      %234 = sbr.rel (0) target = $region53
    $region52: #{tpu_custom_call.1} parent=1 // pred_region
      %236 = dma.done [#allocation4], 128
    $region53: #{tpu_custom_call.1} parent=1 // pred_fallthru
      _
    %237 = vsyncpa [#allocation3], 1
    %238 = vsyncpa [#allocation6], 1
    %239 = vsyncpa [#allocation9], 1
    %240 = vsyncpa [#allocation4], 1

// kernel: tpu_custom_call.1
$region0: #{tpu_custom_call.1}
  #allocation0 [shape = 'u32[]', space=smem, size = 0x4, offset = 0x4, fixed_abs, tag = 'smem constant byte address 0x4 - core index']
  #allocation1 [shape = 'u32[72,128]{1,0:T(1,128)}', space=vmem, size = 0x9000, scoped, tag = 'internal scratch']
  %s0 = inlined_call_operand.hbm [shape: f32[8,128], index: 0, kind: input, shape index: {}]
  %s1 = inlined_call_operand.hbm [shape: f32[128,128], index: 1, kind: input, shape index: {}]
  %s2 = inlined_call_operand.vmem [shape: f32[1,128], index: 2, kind: input, shape index: {}]
  %s3 = inlined_call_operand.hbm [shape: f32[128,128], index: 3, kind: input, shape index: {}]
  %s4 = inlined_call_operand.vmem [shape: f32[1,128], index: 4, kind: input, shape index: {}]
  %s5 = inlined_call_operand.hbm [shape: f32[128,128], index: 5, kind: input, shape index: {}]
  %s6 = inlined_call_operand.vmem [shape: f32[1,128], index: 6, kind: input, shape index: {}]
  %s7 = inlined_call_operand.hbm [shape: f32[8,128], index: 7, kind: output, shape index: {}]
  %s8 = sld [smem:[#allocation0]]
  $region54: #{tpu_custom_call.1} parent=0
    _
  %s10 = ssub.s32 1, %s8
  %s11 = scalar_select 0, %s10, %s8
  $region1: #{tpu_custom_call.1} parent=0
    #allocation2 [shape = 'u8[4096]{0}', space=vmem, size = 0x1000, scoped, tag = 'input window, operand 0, single buffered']
    #allocation3 [shape = 's32[1]{0}', space=sflag, size = 0x4, scoped, tag = 'scoped memory for tpu_custom_call.1']
    #allocation4 [shape = 's32[1]{0}', space=sflag, size = 0x4, scoped, tag = 'scoped memory for tpu_custom_call.1']
    #allocation5 [shape = 'u8[65536]{0}', space=vmem, size = 0x10000, scoped, tag = 'input window, operand 1, single buffered']
    #allocation6 [shape = 's32[1]{0}', space=sflag, size = 0x4, scoped, tag = 'scoped memory for tpu_custom_call.1']
    #allocation7 [shape = 'u8[65536]{0}', space=vmem, size = 0x10000, scoped, tag = 'input window, operand 3, single buffered']
    #allocation8 [shape = 'u8[65536]{0}', space=vmem, size = 0x10000, scoped, tag = 'input window, operand 5, single buffered']
    #allocation9 [shape = 's32[1]{0}', space=sflag, size = 0x4, scoped, tag = 'scoped memory for tpu_custom_call.1']
    #allocation10 [shape = 'u8[4096]{0}', space=vmem, size = 0x1000, scoped, tag = 'output window, operand 0, single buffered']
    %12 = vsyncpa [#allocation3], 0
    %13 = vsyncpa [#allocation6], 0
    %14 = vsyncpa [#allocation9], 0
    %15 = vsyncpa [#allocation4], 0
    // Predicated region
    $region2: #{tpu_custom_call.1} parent=1 // pred_check
      _
    $region3: #{tpu_custom_call.1} parent=1 // pred_check_branch
      %17 = sbr.rel (0) target = $region5
    $region4: #{tpu_custom_call.1} parent=1 // pred_region
      %19 = vsyncadd [#allocation3], 0
      %s21 = sshll.u32 %s0, 4
      %s22 = int_to_ptr.hbm [resolvable:$true] %s21
      %s23 = sshll.u32 [#allocation2], 4
      %s24 = int_to_ptr.vmem [resolvable:$true] %s23
      %26 = dma.hbm_to_vmem [thread:$0]  %s22, 128, %s24, [#allocation3]
    $region5: #{tpu_custom_call.1} parent=1 // pred_fallthru
      _
    // Predicated region
    $region6: #{tpu_custom_call.1} parent=1 // pred_check
      _
    $region7: #{tpu_custom_call.1} parent=1 // pred_check_branch
      %28 = sbr.rel (0) target = $region9
    $region8: #{tpu_custom_call.1} parent=1 // pred_region
      %30 = vsyncadd [#allocation6], 0
      %s31 = sshll.u32 %s1, 4
      %s32 = int_to_ptr.hbm [resolvable:$true] %s31
      %s33 = sshll.u32 [#allocation5], 4
      %s34 = int_to_ptr.vmem [resolvable:$true] %s33
      %39 = dma.hbm_to_vmem [thread:$0]  %s32, 2048, %s34, [#allocation6], 128, 128, 8
    $region9: #{tpu_custom_call.1} parent=1 // pred_fallthru
      _
    // Predicated region
    $region10: #{tpu_custom_call.1} parent=1 // pred_check
      _
    $region11: #{tpu_custom_call.1} parent=1 // pred_check_branch
      %41 = sbr.rel (0) target = $region13
    $region12: #{tpu_custom_call.1} parent=1 // pred_region
      _
    $region13: #{tpu_custom_call.1} parent=1 // pred_fallthru
      _
    // Predicated region
    $region14: #{tpu_custom_call.1} parent=1 // pred_check
      _
    $region15: #{tpu_custom_call.1} parent=1 // pred_check_branch
      %43 = sbr.rel (0) target = $region17
    $region16: #{tpu_custom_call.1} parent=1 // pred_region
      %45 = vsyncadd [#allocation6], 0
      %s46 = sshll.u32 %s3, 4
      %s47 = int_to_ptr.hbm [resolvable:$true] %s46
      %s48 = sshll.u32 [#allocation7], 4
      %s49 = int_to_ptr.vmem [resolvable:$true] %s48
      %54 = dma.hbm_to_vmem [thread:$0]  %s47, 2048, %s49, [#allocation6], 128, 128, 8
    $region17: #{tpu_custom_call.1} parent=1 // pred_fallthru
      _
    // Predicated region
    $region18: #{tpu_custom_call.1} parent=1 // pred_check
      _
    $region19: #{tpu_custom_call.1} parent=1 // pred_check_branch
      %56 = sbr.rel (0) target = $region21
    $region20: #{tpu_custom_call.1} parent=1 // pred_region
      _
    $region21: #{tpu_custom_call.1} parent=1 // pred_fallthru
      _
    // Predicated region
    $region22: #{tpu_custom_call.1} parent=1 // pred_check
      _
    $region23: #{tpu_custom_call.1} parent=1 // pred_check_branch
      %58 = sbr.rel (0) target = $region25
    $region24: #{tpu_custom_call.1} parent=1 // pred_region
      %60 = vsyncadd [#allocation9], 0
      %s61 = sshll.u32 %s5, 4
      %s62 = int_to_ptr.hbm [resolvable:$true] %s61
      %s63 = sshll.u32 [#allocation8], 4
      %s64 = int_to_ptr.vmem [resolvable:$true] %s63
      %69 = dma.hbm_to_vmem [thread:$0]  %s62, 2048, %s64, [#allocation9], 128, 128, 8
    $region25: #{tpu_custom_call.1} parent=1 // pred_fallthru
      _
    // Predicated region
    $region26: #{tpu_custom_call.1} parent=1 // pred_check
      _
    $region27: #{tpu_custom_call.1} parent=1 // pred_check_branch
      %71 = sbr.rel (0) target = $region29
    $region28: #{tpu_custom_call.1} parent=1 // pred_region
      _
    $region29: #{tpu_custom_call.1} parent=1 // pred_fallthru
      _
    // Predicated region
    $region30: #{tpu_custom_call.1} parent=1 // pred_check
      _
    $region31: #{tpu_custom_call.1} parent=1 // pred_check_branch
      %73 = sbr.rel (0) target = $region33
    $region32: #{tpu_custom_call.1} parent=1 // pred_region
      %75 = dma.done [#allocation3], 128
    $region33: #{tpu_custom_call.1} parent=1 // pred_fallthru
      _
    // Predicated region
    $region34: #{tpu_custom_call.1} parent=1 // pred_check
      _
    $region35: #{tpu_custom_call.1} parent=1 // pred_check_branch
      %77 = sbr.rel (0) target = $region37
    $region36: #{tpu_custom_call.1} parent=1 // pred_region
      %79 = dma.done [#allocation6], 2048
    $region37: #{tpu_custom_call.1} parent=1 // pred_fallthru
      _
    // Predicated region
    $region38: #{tpu_custom_call.1} parent=1 // pred_check
      _
    $region39: #{tpu_custom_call.1} parent=1 // pred_check_branch
      %81 = sbr.rel (0) target = $region41
    $region40: #{tpu_custom_call.1} parent=1 // pred_region
      %83 = dma.done [#allocation6], 2048
    $region41: #{tpu_custom_call.1} parent=1 // pred_fallthru
      _
    // Predicated region
    $region42: #{tpu_custom_call.1} parent=1 // pred_check
      _
    $region43: #{tpu_custom_call.1} parent=1 // pred_check_branch
      %85 = sbr.rel (0) target = $region45
    $region44: #{tpu_custom_call.1} parent=1 // pred_region
      %87 = dma.done [#allocation9], 2048
    $region45: #{tpu_custom_call.1} parent=1 // pred_fallthru
      _
    %v88 = vld [vmem:[#allocation2] sm:$0xff]
    %v89 = vld [vmem:[#allocation5] sm:$0xff]
    %v90 = vld [vmem:[#allocation5 + $0x8] sm:$0xff]
    %v91 = vld [vmem:[#allocation5 + $0x10] sm:$0xff]
    %v92 = vld [vmem:[#allocation5 + $0x18] sm:$0xff]
    %v93 = vld [vmem:[#allocation5 + $0x20] sm:$0xff]
    %v94 = vld [vmem:[#allocation5 + $0x28] sm:$0xff]
    %v95 = vld [vmem:[#allocation5 + $0x30] sm:$0xff]
    %v96 = vld [vmem:[#allocation5 + $0x38] sm:$0xff]
    %v97 = vld [vmem:[#allocation5 + $0x40] sm:$0xff]
    %v98 = vld [vmem:[#allocation5 + $0x48] sm:$0xff]
    %v99 = vld [vmem:[#allocation5 + $0x50] sm:$0xff]
    %v100 = vld [vmem:[#allocation5 + $0x58] sm:$0xff]
    %v101 = vld [vmem:[#allocation5 + $0x60] sm:$0xff]
    %v102 = vld [vmem:[#allocation5 + $0x68] sm:$0xff]
    %v103 = vld [vmem:[#allocation5 + $0x70] sm:$0xff]
    %v104 = vld [vmem:[#allocation5 + $0x78] sm:$0xff]
    %v105 = vld [vmem:[%s2] sm:$0x1]
    %v107 = vperm.slane %v105, 0
    %109 = vmatpush.msra.mxu0 %v104
    %110 = vmatpush.msra.mxu0 %v103
    %111 = vmatpush.msra.mxu0 %v102
    %112 = vmatpush.msra.mxu0 %v101
    %113 = vmatpush.msra.mxu0 %v100
    %114 = vmatpush.msra.mxu0 %v99
    %115 = vmatpush.msra.mxu0 %v98
    %116 = vmatpush.msra.mxu0 %v97
    %117 = vmatpush.msra.mxu0 %v96
    %118 = vmatpush.msra.mxu0 %v95
    %119 = vmatpush.msra.mxu0 %v94
    %120 = vmatpush.msra.mxu0 %v93
    %121 = vmatpush.msra.mxu0 %v92
    %122 = vmatpush.msra.mxu0 %v91
    %123 = vmatpush.msra.mxu0 %v90
    %124 = vmatpush.msra.mxu0 %v89
    %125 = vmatmul.f32.gmra.mxu0 %v88
    %v126 = vpop.f32.mrf.mxu0
    %v127 = vadd.f32 %v107, %v126
    %128 = vdwg.mxu0
    %v129 = vsub.f32 0.0, %v127
    %v130 = vmul.f32 %v129, 1.442695
    %v131 = vpow.pop %v130
    %v132 = vadd.f32 %v131, 1.0
    %v133 = vrcp.pop %v132
    %v134 = vmul.f32 %v127, %v133
    %v135 = vld [vmem:[#allocation7] sm:$0xff]
    %v136 = vld [vmem:[#allocation7 + $0x8] sm:$0xff]
    %v137 = vld [vmem:[#allocation7 + $0x10] sm:$0xff]
    %v138 = vld [vmem:[#allocation7 + $0x18] sm:$0xff]
    %v139 = vld [vmem:[#allocation7 + $0x20] sm:$0xff]
    %v140 = vld [vmem:[#allocation7 + $0x28] sm:$0xff]
    %v141 = vld [vmem:[#allocation7 + $0x30] sm:$0xff]
    %v142 = vld [vmem:[#allocation7 + $0x38] sm:$0xff]
    %v143 = vld [vmem:[#allocation7 + $0x40] sm:$0xff]
    %v144 = vld [vmem:[#allocation7 + $0x48] sm:$0xff]
    %v145 = vld [vmem:[#allocation7 + $0x50] sm:$0xff]
    %v146 = vld [vmem:[#allocation7 + $0x58] sm:$0xff]
    %v147 = vld [vmem:[#allocation7 + $0x60] sm:$0xff]
    %v148 = vld [vmem:[#allocation7 + $0x68] sm:$0xff]
    %v149 = vld [vmem:[#allocation7 + $0x70] sm:$0xff]
    %v150 = vld [vmem:[#allocation7 + $0x78] sm:$0xff]
    %v151 = vld [vmem:[%s4] sm:$0x1]
    %v153 = vperm.slane %v151, 0
    %155 = vmatpush.msra.mxu0 %v150
    %156 = vmatpush.msra.mxu0 %v149
    %157 = vmatpush.msra.mxu0 %v148
    %158 = vmatpush.msra.mxu0 %v147
    %159 = vmatpush.msra.mxu0 %v146
    %160 = vmatpush.msra.mxu0 %v145
    %161 = vmatpush.msra.mxu0 %v144
    %162 = vmatpush.msra.mxu0 %v143
    %163 = vmatpush.msra.mxu0 %v142
    %164 = vmatpush.msra.mxu0 %v141
    %165 = vmatpush.msra.mxu0 %v140
    %166 = vmatpush.msra.mxu0 %v139
    %167 = vmatpush.msra.mxu0 %v138
    %168 = vmatpush.msra.mxu0 %v137
    %169 = vmatpush.msra.mxu0 %v136
    %170 = vmatpush.msra.mxu0 %v135
    %171 = vmatmul.f32.gmra.mxu0 %v134
    %v172 = vpop.f32.mrf.mxu0
    %v173 = vadd.f32 %v153, %v172
    %174 = vdwg.mxu0
    %v175 = vsub.f32 0.0, %v173
    %v176 = vmul.f32 %v175, 1.442695
    %v177 = vpow.pop %v176
    %v178 = vadd.f32 %v177, 1.0
    %v179 = vrcp.pop %v178
    %v180 = vmul.f32 %v173, %v179
    %v181 = vld [vmem:[#allocation8] sm:$0xff]
    %v182 = vld [vmem:[#allocation8 + $0x8] sm:$0xff]
    %v183 = vld [vmem:[#allocation8 + $0x10] sm:$0xff]
    %v184 = vld [vmem:[#allocation8 + $0x18] sm:$0xff]
    %v185 = vld [vmem:[#allocation8 + $0x20] sm:$0xff]
    %v186 = vld [vmem:[#allocation8 + $0x28] sm:$0xff]
    %v187 = vld [vmem:[#allocation8 + $0x30] sm:$0xff]
    %v188 = vld [vmem:[#allocation8 + $0x38] sm:$0xff]
    %v189 = vld [vmem:[#allocation8 + $0x40] sm:$0xff]
    %v190 = vld [vmem:[#allocation8 + $0x48] sm:$0xff]
    %v191 = vld [vmem:[#allocation8 + $0x50] sm:$0xff]
    %v192 = vld [vmem:[#allocation8 + $0x58] sm:$0xff]
    %v193 = vld [vmem:[#allocation8 + $0x60] sm:$0xff]
    %v194 = vld [vmem:[#allocation8 + $0x68] sm:$0xff]
    %v195 = vld [vmem:[#allocation8 + $0x70] sm:$0xff]
    %v196 = vld [vmem:[#allocation8 + $0x78] sm:$0xff]
    %v197 = vld [vmem:[%s6] sm:$0x1]
    %v199 = vperm.slane %v197, 0
    %201 = vmatpush.msra.mxu0 %v196
    %202 = vmatpush.msra.mxu0 %v195
    %203 = vmatpush.msra.mxu0 %v194
    %204 = vmatpush.msra.mxu0 %v193
    %205 = vmatpush.msra.mxu0 %v192
    %206 = vmatpush.msra.mxu0 %v191
    %207 = vmatpush.msra.mxu0 %v190
    %208 = vmatpush.msra.mxu0 %v189
    %209 = vmatpush.msra.mxu0 %v188
    %210 = vmatpush.msra.mxu0 %v187
    %211 = vmatpush.msra.mxu0 %v186
    %212 = vmatpush.msra.mxu0 %v185
    %213 = vmatpush.msra.mxu0 %v184
    %214 = vmatpush.msra.mxu0 %v183
    %215 = vmatpush.msra.mxu0 %v182
    %216 = vmatpush.msra.mxu0 %v181
    %217 = vmatmul.f32.gmra.mxu0 %v180
    %v218 = vpop.f32.mrf.mxu0
    %v219 = vadd.f32 %v199, %v218
    %220 = vdwg.mxu0
    %221 = vst [vmem:[#allocation10] sm:$0xff] %v219
    // Predicated region
    $region46: #{tpu_custom_call.1} parent=1 // pred_check
      _
    $region47: #{tpu_custom_call.1} parent=1 // pred_check_branch
      %223 = sbr.rel (0) target = $region49
    $region48: #{tpu_custom_call.1} parent=1 // pred_region
      %225 = vsyncadd [#allocation4], 0
      %s227 = sshll.u32 [#allocation10], 4
      %s228 = int_to_ptr.vmem [resolvable:$true] %s227
      %s229 = sshll.u32 %s7, 4
      %s230 = int_to_ptr.hbm [resolvable:$true] %s229
      %232 = dma.vmem_to_hbm [thread:$0]  %s228, 128, %s230, [#allocation4]
    $region49: #{tpu_custom_call.1} parent=1 // pred_fallthru
      _
    // Predicated region
    $region50: #{tpu_custom_call.1} parent=1 // pred_check
      _
    $region51: #{tpu_custom_call.1} parent=1 // pred_check_branch
      %234 = sbr.rel (0) target = $region53
    $region52: #{tpu_custom_call.1} parent=1 // pred_region
      %236 = dma.done [#allocation4], 128
    $region53: #{tpu_custom_call.1} parent=1 // pred_fallthru
      _
    %237 = vsyncpa [#allocation3], 1
    %238 = vsyncpa [#allocation6], 1
    %239 = vsyncpa [#allocation9], 1
    %240 = vsyncpa [#allocation4], 1

</llo_original>
